<compile_context>
chip_gen: v6e
topology: v6e:2x2x1
jax: 0.10.0
libtpu: 0.0.40
codegen_flags: <defaults>
</compile_context>

<pallas_src>
import jax
import jax.numpy as jnp
from jax.experimental import pallas as pl
from jax.experimental.pallas import tpu as pltpu


def _subsample_kernel(x_ref, scale_ref, offs_ref, o_ref):
    # x_ref:     (1, 4, MT)  the four 2x2 pool taps, lane-flattened over (c,i,j)
    # scale_ref: (1, MT)     0.25 * alpha[c] per output element
    # offs_ref:  (1, MT)     bias[c]         per output element
    # o_ref:     (1, 1, MT)
    x = x_ref[...].astype(jnp.float32)                              # f32 accumulate
    s = (x[:, 0, :] + x[:, 1, :]) + (x[:, 2, :] + x[:, 3, :])       # (1, MT)
    o_ref[:, 0, :] = (scale_ref[...] * s + offs_ref[...]).astype(o_ref.dtype)


def subsampler_forward(x, alpha, bias, *, lane_tile_cap=128 * 1024):
    """x: (B, C, H, W); alpha, bias: (C,).  Returns (B, C, H//2, W//2)."""
    B, C, H, W = x.shape
    assert H % 2 == 0 and W % 2 == 0, "spatial size must be divisible by 2"
    assert alpha.shape == (C,) and bias.shape == (C,)
    Hh, Wh = H // 2, W // 2
    M = C * Hh * Wh  # output elements per batch item

    # --- layout plumbing (pure XLA, not compute) ------------------------------
    # (B,C,H,W) -> (B, C, Hh, 2, Wh, 2) -> (B, 2, 2, C, Hh, Wh) -> (B, 4, M)
    x6 = x.reshape(B, C, Hh, 2, Wh, 2)
    xp = jnp.transpose(x6, (0, 3, 5, 1, 2, 4)).reshape(B, 4, M)

    # Per-output-element affine params; 0.25 avg-pool factor folded into scale.
    scale = jnp.repeat(0.25 * alpha.astype(jnp.float32), Hh * Wh).reshape(1, M)
    offs = jnp.repeat(bias.astype(jnp.float32), Hh * Wh).reshape(1, M)

    # --- lane tiling ----------------------------------------------------------
    # Whole M in one block when it fits; otherwise 128-aligned tiles sized so
    # the double-buffered (x + scale + offs + out) working set stays ~<8 MiB.
    if M <= lane_tile_cap:
        m_tile = M
    else:
        m_tile = lane_tile_cap  # multiple of 128
    n_m = pl.cdiv(M, m_tile)

    out = pl.pallas_call(
        _subsample_kernel,
        out_shape=jax.ShapeDtypeStruct((B, 1, M), x.dtype),
        grid=(B, n_m),
        in_specs=[
            pl.BlockSpec((1, 4, m_tile), lambda b, m: (b, 0, m)),
            pl.BlockSpec((1, m_tile), lambda b, m: (0, m)),
            pl.BlockSpec((1, m_tile), lambda b, m: (0, m)),
        ],
        out_specs=pl.BlockSpec((1, 1, m_tile), lambda b, m: (b, 0, m)),
        compiler_params=pltpu.CompilerParams(
            dimension_semantics=("parallel", "parallel"),
            vmem_limit_bytes=32 * 1024 * 1024,
        ),
    )(xp, scale, offs)

    return out.reshape(B, C, Hh, Wh)


if __name__ == "__main__":
    B, C, H, W = 2, 4, 16, 16

    key = jax.random.PRNGKey(0)
    kx, ka, kb = jax.random.split(key, 3)
    x = jax.random.normal(kx, (B, C, H, W), dtype=jnp.float32)

    # PyTorch init is ones / zeros; perturb slightly so the affine transform is
    # actually exercised.
    alpha = jnp.ones((C,), jnp.float32) + 0.1 * jax.random.normal(ka, (C,), jnp.float32)
    bias = jnp.zeros((C,), jnp.float32) + 0.1 * jax.random.normal(kb, (C,), jnp.float32)

    out = subsampler_forward(x, alpha, bias)
    out = jax.block_until_ready(out)

    # Pure-JAX reference.
    pooled_ref = x.reshape(B, C, H // 2, 2, W // 2, 2).mean(axis=(3, 5))
    ref = alpha.reshape(1, C, 1, 1) * pooled_ref + bias.reshape(1, C, 1, 1)

    assert out.shape == (B, C, H // 2, W // 2)
    assert jnp.allclose(out, ref, atol=1e-5, rtol=1e-5), "mismatch vs reference"

    print("KERNEL_OK")
</pallas_src>

<mosaic_0001>
module attributes {stable_mosaic.version = 11 : i64} {
  func.func @_subsample_kernel(%arg0: i32, %arg1: i32, %arg2: memref<1x4x256xf32, #tpu.memory_space<vmem>>, %arg3: memref<1x256xf32, #tpu.memory_space<vmem>>, %arg4: memref<1x256xf32, #tpu.memory_space<vmem>>, %arg5: memref<1x1x256xf32, #tpu.memory_space<vmem>>) attributes {dimension_semantics = [#tpu.dimension_semantics<parallel>, #tpu.dimension_semantics<parallel>], iteration_bounds = array<i64: 2, 1>, scalar_prefetch = 0 : i64, scratch_operands = 0 : i64, tpu.core_type = #tpu.core_type<tc>, window_params = [{transform_indices = @transform_0, window_bounds = array<i64: 1, 4, 256>}, {transform_indices = @transform_1, window_bounds = array<i64: 1, 256>}, {transform_indices = @transform_2, window_bounds = array<i64: 1, 256>}, {transform_indices = @transform_3, window_bounds = array<i64: 1, 1, 256>}]} {
    %c0 = arith.constant 0 : index
    %c0_0 = arith.constant 0 : index
    %c0_1 = arith.constant 0 : index
    %0 = vector.load %arg2[%c0, %c0_0, %c0_1] : memref<1x4x256xf32, #tpu.memory_space<vmem>>, vector<1x4x256xf32>
    %1 = vector.extract_strided_slice %0 {offsets = [0, 0, 0], sizes = [1, 1, 256], strides = [1, 1, 1]} : vector<1x4x256xf32> to vector<1x1x256xf32>
    %2 = vector.shape_cast %1 : vector<1x1x256xf32> to vector<1x256xf32>
    %3 = vector.extract_strided_slice %0 {offsets = [0, 1, 0], sizes = [1, 1, 256], strides = [1, 1, 1]} : vector<1x4x256xf32> to vector<1x1x256xf32>
    %4 = vector.shape_cast %3 : vector<1x1x256xf32> to vector<1x256xf32>
    %5 = arith.addf %2, %4 : vector<1x256xf32>
    %6 = vector.extract_strided_slice %0 {offsets = [0, 2, 0], sizes = [1, 1, 256], strides = [1, 1, 1]} : vector<1x4x256xf32> to vector<1x1x256xf32>
    %7 = vector.shape_cast %6 : vector<1x1x256xf32> to vector<1x256xf32>
    %8 = vector.extract_strided_slice %0 {offsets = [0, 3, 0], sizes = [1, 1, 256], strides = [1, 1, 1]} : vector<1x4x256xf32> to vector<1x1x256xf32>
    %9 = vector.shape_cast %8 : vector<1x1x256xf32> to vector<1x256xf32>
    %10 = arith.addf %7, %9 : vector<1x256xf32>
    %11 = arith.addf %5, %10 : vector<1x256xf32>
    %c0_2 = arith.constant 0 : index
    %c0_3 = arith.constant 0 : index
    %12 = vector.load %arg3[%c0_2, %c0_3] : memref<1x256xf32, #tpu.memory_space<vmem>>, vector<1x256xf32>
    %13 = arith.mulf %12, %11 : vector<1x256xf32>
    %c0_4 = arith.constant 0 : index
    %c0_5 = arith.constant 0 : index
    %14 = vector.load %arg4[%c0_4, %c0_5] : memref<1x256xf32, #tpu.memory_space<vmem>>, vector<1x256xf32>
    %15 = arith.addf %13, %14 : vector<1x256xf32>
    %c0_6 = arith.constant 0 : index
    %c0_7 = arith.constant 0 : index
    %c0_8 = arith.constant 0 : index
    %16 = vector.load %arg5[%c0_6, %c0_7, %c0_8] : memref<1x1x256xf32, #tpu.memory_space<vmem>>, vector<1x1x256xf32>
    %17 = vector.shape_cast %16 : vector<1x1x256xf32> to vector<1x256xf32>
    %18 = vector.shape_cast %15 : vector<1x256xf32> to vector<1x1x256xf32>
    tpu.vector_store %arg5[%c0_6, %c0_7, %c0_8], %18 {strides = array<i32>} : memref<1x1x256xf32, #tpu.memory_space<vmem>>, vector<1x1x256xf32>,
    return
  }
  func.func @transform_0(%arg0: i32, %arg1: i32) -> (i32, i32, i32) {
    %c0_i32 = arith.constant 0 : i32
    %c0_i32_0 = arith.constant 0 : i32
    return %arg0, %c0_i32, %arg1 : i32, i32, i32
  }
  func.func @transform_1(%arg0: i32, %arg1: i32) -> (i32, i32) {
    %c0_i32 = arith.constant 0 : i32
    %c0_i32_0 = arith.constant 0 : i32
    return %c0_i32, %arg1 : i32, i32
  }
  func.func @transform_2(%arg0: i32, %arg1: i32) -> (i32, i32) {
    %c0_i32 = arith.constant 0 : i32
    %c0_i32_0 = arith.constant 0 : i32
    return %c0_i32, %arg1 : i32, i32
  }
  func.func @transform_3(%arg0: i32, %arg1: i32) -> (i32, i32, i32) {
    %c0_i32 = arith.constant 0 : i32
    %c0_i32_0 = arith.constant 0 : i32
    return %arg0, %c0_i32, %arg1 : i32, i32, i32
  }
}

</mosaic_0001>

<llo_original>
// kernel: tpu_custom_call.1
$region0: #{tpu_custom_call.1}
  #allocation0 [shape = 'u32[]', space=smem, size = 0x4, offset = 0x4, fixed_abs, tag = 'smem constant byte address 0x4 - core index']
  #allocation1 [shape = 'u32[144,128]{1,0:T(1,128)}', space=vmem, size = 0x12000, scoped, tag = 'internal scratch']
  %s0 = inlined_call_operand.hbm [shape: f32[2,4,256], index: 0, kind: input, shape index: {}]
  %s1 = inlined_call_operand.hbm [shape: f32[1,256], index: 1, kind: input, shape index: {}]
  %s2 = inlined_call_operand.vmem [shape: f32[1,256], index: 2, kind: input, shape index: {}]
  %s3 = inlined_call_operand.hbm [shape: f32[2,1,256], index: 3, kind: output, shape index: {}]
  %s4 = sld [smem:[#allocation0]]
  $region53: #{tpu_custom_call.1} parent=0
    _
  %s6 = ssub.s32 1, %s4
  %s7 = scalar_select 0, %s6, %s4
  $region1: #{tpu_custom_call.1} parent=0
    #allocation2 [shape = 'u8[8192]{0}', space=vmem, size = 0x2000, scoped, tag = 'input window, operand 0']
    #allocation3 [shape = 's32[2]{0}', space=sflag, size = 0x8, scoped, tag = 'scoped memory for tpu_custom_call.1']
    #allocation4 [shape = 's32[2]{0}', space=sflag, size = 0x8, scoped, tag = 'scoped memory for tpu_custom_call.1']
    #allocation5 [shape = 'u8[1024]{0}', space=vmem, size = 0x400, scoped, tag = 'input window, operand 1, single buffered']
    #allocation6 [shape = 's32[1]{0}', space=sflag, size = 0x4, scoped, tag = 'scoped memory for tpu_custom_call.1']
    #allocation7 [shape = 'u8[2048]{0}', space=vmem, size = 0x800, scoped, tag = 'output window, operand 0']
    %8 = vsyncpa [#allocation3], 0
    %s9 = scalar_lea.sflag [#allocation3], 1
    %10 = vsyncpa %s9, 0
    %11 = vsyncpa [#allocation6], 0
    %12 = vsyncpa [#allocation4], 0
    %s13 = scalar_lea.sflag [#allocation4], 1
    %14 = vsyncpa %s13, 0
    loop: start=0, step=1, limit=4
    $region2: #{tpu_custom_call.1} parent=1 // loop_pre_header
      _
    $region3: #{tpu_custom_call.1} parent=1 // loop_header
      %s16 = sphi 0, %s20
      %p17 = scmp.ge.s32.totalorder %s16, 4
      %s23 = sphi 0, %s35
      %s24 = sphi 0, %s31
      %s25 = sphi 0, %s23
      %s26 = sphi 0, %s24
      %s27 = sphi 0, %s25
      %s28 = sphi 0, %s26
      %s40 = sphi 0, %s42
      %s43 = sphi 0, %s40
      %s44 = sphi 0, %s43
      %s60 = sphi 0, %s44
      %s66 = sphi 0, %s68
      %s69 = sphi 0, %s66
      %s70 = sphi 0, %s69
      %s86 = sphi 0, %s70
      %s92 = sphi 0, %s94
      %s95 = sphi 0, %s92
      %s96 = sphi 0, %s95
      %s112 = sphi 0, %s96
      %s120 = sphi 0, %s122
      %s123 = sphi 0, %s120
      %s124 = sphi 0, %s123
      %s140 = sphi 0, %s124
    $region4: #{tpu_custom_call.1} parent=1 // loop_header_branch
      %19 = sbr.rel (%p17) target = $region8
    $region5: #{tpu_custom_call.1} parent=1 // loop_body
      %s21 = ssub.s32 %s16, 1
      %s22 = ssub.s32 %s16, 2
      %s29 = sadd.s32 1, %s24
      %p30 = scmp.ge.s32.totalorder %s29, 1
      %s31 = scalar_select %p30, 0, %s29
      %s32 = sadd.s32 1, %s23
      %s33 = scalar_select %p30, %s32, %s23
      %p34 = scmp.ge.s32.totalorder %s33, 2
      %s35 = scalar_select %p34, 0, %s33
      %s36 = ssub.s32 %s23, %s35
      %s37 = ssub.s32 %s24, %s31
      %s38 = sor.u32 %s36, %s37
      %p39 = scmp.eq.s32.totalorder %s38, 0
      %s41 = sadd.s32 %s40, 1
      %s42 = scalar_select %p39, %s40, %s41
      %p45 = pneg %p39
      %p46 = scmp.eq.s32.totalorder %s16, 1
      %p47 = por %p45, %p46
      %p48 = scmp.ne.s32.totalorder %s40, %s43
      %p49 = scmp.eq.s32.totalorder %s16, 0
      %p50 = por %p48, %p49
      %p51 = scmp.ne.s32.totalorder %s40, %s43
      %p52 = scmp.eq.s32.totalorder %s21, 1
      %p53 = por %p51, %p52
      %p54 = scmp.ne.s32.totalorder %s43, %s44
      %p55 = scmp.eq.s32.totalorder %s21, 0
      %p56 = por %p54, %p55
      %p57 = scmp.ne.s32.totalorder %s43, %s44
      %p58 = scmp.eq.s32.totalorder %s22, 1
      %p59 = por %p57, %p58
      %p61 = scmp.ne.s32.totalorder %s44, %s60
      %p62 = scmp.eq.s32.totalorder %s22, 0
      %p63 = por %p61, %p62
      %s64 = ssub.s32 %s24, %s31
      %p65 = scmp.eq.s32.totalorder %s64, 0
      %s67 = sadd.s32 %s66, 1
      %s68 = scalar_select %p65, %s66, %s67
      %p71 = pneg %p65
      %p72 = scmp.eq.s32.totalorder %s16, 1
      %p73 = por %p71, %p72
      %p74 = scmp.ne.s32.totalorder %s66, %s69
      %p75 = scmp.eq.s32.totalorder %s16, 0
      %p76 = por %p74, %p75
      %p77 = scmp.ne.s32.totalorder %s66, %s69
      %p78 = scmp.eq.s32.totalorder %s21, 1
      %p79 = por %p77, %p78
      %p80 = scmp.ne.s32.totalorder %s69, %s70
      %p81 = scmp.eq.s32.totalorder %s21, 0
      %p82 = por %p80, %p81
      %p83 = scmp.ne.s32.totalorder %s69, %s70
      %p84 = scmp.eq.s32.totalorder %s22, 1
      %p85 = por %p83, %p84
      %p87 = scmp.ne.s32.totalorder %s70, %s86
      %p88 = scmp.eq.s32.totalorder %s22, 0
      %p89 = por %p87, %p88
      %s90 = ssub.s32 %s24, %s31
      %p91 = scmp.eq.s32.totalorder %s90, 0
      %s93 = sadd.s32 %s92, 1
      %s94 = scalar_select %p91, %s92, %s93
      %p97 = pneg %p91
      %p98 = scmp.eq.s32.totalorder %s16, 1
      %p99 = por %p97, %p98
      %p100 = scmp.ne.s32.totalorder %s92, %s95
      %p101 = scmp.eq.s32.totalorder %s16, 0
      %p102 = por %p100, %p101
      %p103 = scmp.ne.s32.totalorder %s92, %s95
      %p104 = scmp.eq.s32.totalorder %s21, 1
      %p105 = por %p103, %p104
      %p106 = scmp.ne.s32.totalorder %s95, %s96
      %p107 = scmp.eq.s32.totalorder %s21, 0
      %p108 = por %p106, %p107
      %p109 = scmp.ne.s32.totalorder %s95, %s96
      %p110 = scmp.eq.s32.totalorder %s22, 1
      %p111 = por %p109, %p110
      %p113 = scmp.ne.s32.totalorder %s96, %s112
      %p114 = scmp.eq.s32.totalorder %s22, 0
      %p115 = por %p113, %p114
      %s116 = ssub.s32 %s23, %s35
      %s117 = ssub.s32 %s24, %s31
      %s118 = sor.u32 %s116, %s117
      %p119 = scmp.eq.s32.totalorder %s118, 0
      %s121 = sadd.s32 %s120, 1
      %s122 = scalar_select %p119, %s120, %s121
      %p125 = pneg %p119
      %p126 = scmp.eq.s32.totalorder %s16, 1
      %p127 = por %p125, %p126
      %p128 = scmp.ne.s32.totalorder %s120, %s123
      %p129 = scmp.eq.s32.totalorder %s16, 0
      %p130 = por %p128, %p129
      %p131 = scmp.ne.s32.totalorder %s120, %s123
      %p132 = scmp.eq.s32.totalorder %s21, 1
      %p133 = por %p131, %p132
      %p134 = scmp.ne.s32.totalorder %s123, %s124
      %p135 = scmp.eq.s32.totalorder %s21, 0
      %p136 = por %p134, %p135
      %p137 = scmp.ne.s32.totalorder %s123, %s124
      %p138 = scmp.eq.s32.totalorder %s22, 1
      %p139 = por %p137, %p138
      %p141 = scmp.ne.s32.totalorder %s124, %s140
      %p142 = scmp.eq.s32.totalorder %s22, 0
      %p143 = por %p141, %p142
      %p144 = scmp.le.s32.totalorder 1, %s16
      %p145 = scmp.lt.s32.totalorder %s16, 3
      %p146 = pnand %p144, %p145
      %p147 = pneg %p146
      // Predicated region
      $region9: #{tpu_custom_call.1} parent=5 // pred_check
        _
      $region10: #{tpu_custom_call.1} parent=5 // pred_check_branch
        %149 = sbr.rel (%p146) target = $region12
      $region11: #{tpu_custom_call.1} parent=5 // pred_region
        %s150 = ssub.s32 %s16, 1
        // Predicated region
        $region13: #{tpu_custom_call.1} parent=11 // pred_check
          %p151 = pneg %p82
        $region14: #{tpu_custom_call.1} parent=11 // pred_check_branch
          %153 = sbr.rel (%p151) target = $region16
        $region15: #{tpu_custom_call.1} parent=11 // pred_region
          %s154 = smul.u32 2, %s26
          %s156 = ssub.s32 32, 32
          %157 = vsyncadd [#allocation6], %s156
          %s158 = smul.addr %s154, 16
          %s159 = scalar_lea.hbm %s1, %s158
          %s161 = sshll.u32 [#allocation5], 4
          %s162 = int_to_ptr.vmem [resolvable:$true] %s161
          %164 = dma.hbm_to_vmem [thread:$0]  %s159, 32, %s162, [#allocation6]
        $region16: #{tpu_custom_call.1} parent=11 // pred_fallthru
          _
        // Predicated region
        $region17: #{tpu_custom_call.1} parent=11 // pred_check
          %p165 = pneg %p108
        $region18: #{tpu_custom_call.1} parent=11 // pred_check_branch
          %167 = sbr.rel (%p165) target = $region20
        $region19: #{tpu_custom_call.1} parent=11 // pred_region
          %s168 = smul.u32 2, %s26
          %p169 = scmp.lt.s32.totalorder %s168, 1
          %s170 = scalar_select %p169, %s168, 1
          %s171 = scalar_lea.vmem %s2, %s170
          %s172 = smul.u32 2, %s26
        $region20: #{tpu_custom_call.1} parent=11 // pred_fallthru
          _
      $region12: #{tpu_custom_call.1} parent=5 // pred_fallthru
        _
      %p173 = scmp.lt.s32.totalorder %s16, 2
      // Predicated region
      $region21: #{tpu_custom_call.1} parent=5 // pred_check
        %p174 = pneg %p173
      $region22: #{tpu_custom_call.1} parent=5 // pred_check_branch
        %176 = sbr.rel (%p174) target = $region24
      $region23: #{tpu_custom_call.1} parent=5 // pred_region
        // Predicated region
        $region25: #{tpu_custom_call.1} parent=23 // pred_check
          %p177 = pneg %p50
        $region26: #{tpu_custom_call.1} parent=23 // pred_check_branch
          %179 = sbr.rel (%p177) target = $region28
        $region27: #{tpu_custom_call.1} parent=23 // pred_region
          %s180 = sand.u32 %s40, 1
          %s181 = scalar_lea.sflag [#allocation3], %s180
          %s182 = sand.u32 %s40, 1
          %s183 = smul.addr %s182, 8
          %s184 = scalar_lea.vmem [#allocation2], %s183
          %s185 = smul.u32 2, %s24
          %s187 = ssub.s32 128, 128
          %188 = vsyncadd %s181, %s187
          %s189 = smul.addr %s23, 2
          %s190 = sadd.s32 %s185, %s189
          %s191 = smul.addr %s190, 64
          %s192 = scalar_lea.hbm %s0, %s191
          %s194 = sshll.u32 %s184, 4
          %s195 = int_to_ptr.vmem [resolvable:$true] %s194
          %197 = dma.hbm_to_vmem [thread:$0]  %s192, 128, %s195, %s181
        $region28: #{tpu_custom_call.1} parent=23 // pred_fallthru
          _
      $region24: #{tpu_custom_call.1} parent=5 // pred_fallthru
        _
      %p198 = scmp.le.s32.totalorder 1, %s16
      %p199 = scmp.lt.s32.totalorder %s16, 3
      %p200 = pnand %p198, %p199
      %p201 = pneg %p200
      // Predicated region
      $region29: #{tpu_custom_call.1} parent=5 // pred_check
        _
      $region30: #{tpu_custom_call.1} parent=5 // pred_check_branch
        %203 = sbr.rel (%p200) target = $region32
      $region31: #{tpu_custom_call.1} parent=5 // pred_region
        %s204 = ssub.s32 %s16, 1
        %s205 = sand.u32 %s43, 1
        %s206 = scalar_lea.sflag [#allocation3], %s205
        %s207 = sand.u32 %s43, 1
        %s208 = smul.addr %s207, 8
        %s209 = scalar_lea.vmem [#allocation2], %s208
        // Predicated region
        $region33: #{tpu_custom_call.1} parent=31 // pred_check
          %p210 = pneg %p56
        $region34: #{tpu_custom_call.1} parent=31 // pred_check_branch
          %212 = sbr.rel (%p210) target = $region36
        $region35: #{tpu_custom_call.1} parent=31 // pred_region
          %213 = dma.done %s206, 128
        $region36: #{tpu_custom_call.1} parent=31 // pred_fallthru
          _
        // Predicated region
        $region37: #{tpu_custom_call.1} parent=31 // pred_check
          %p214 = pneg %p82
        $region38: #{tpu_custom_call.1} parent=31 // pred_check_branch
          %216 = sbr.rel (%p214) target = $region40
        $region39: #{tpu_custom_call.1} parent=31 // pred_region
          %217 = dma.done [#allocation6], 32
        $region40: #{tpu_custom_call.1} parent=31 // pred_fallthru
          _
        %s218 = sand.u32 %s43, 1
        %s219 = scalar_lea.sflag [#allocation3], %s218
        %s220 = sand.u32 %s43, 1
        %s221 = smul.addr %s220, 8
        %s222 = scalar_lea.vmem [#allocation2], %s221
        %p223 = pneg %p56
        %p224 = pneg %p53
        %p225 = pneg %p82
        %p226 = pneg %p79
        %s227 = smul.u32 2, %s26
        %p228 = scmp.lt.s32.totalorder %s227, 1
        %s229 = scalar_select %p228, %s227, 1
        %s230 = scalar_lea.vmem %s2, %s229
        %p231 = pneg %p108
        %p232 = pneg %p105
        %p233 = pneg %p136
        %p234 = pneg %p133
        %s235 = sand.u32 %s123, 1
        %s236 = scalar_lea.sflag [#allocation4], %s235
        %s237 = sand.u32 %s123, 1
        %s238 = smul.addr %s237, 2
        %s239 = scalar_lea.vmem [#allocation7], %s238
        %s240 = smul.u32 2, %s26
        %s241 = smul.u32 2, %s26
        %s242 = smul.u32 2, %s26
        %p243 = scmp.lt.s32.totalorder %s242, 1
        %s244 = scalar_select %p243, %s242, 1
        %s245 = scalar_lea.vmem %s2, %s244
        %s246 = smul.u32 2, %s26
        %s247 = smul.u32 2, %s26
        %v248 = vld [vmem:[%s209] sm:$0xff]
        %v250 = vrot.slane %v248, 5
        %v251 = vrot.slane %v250, 4
        %v253 = vadd.f32 %v248, %v251
        %v255 = vrot.slane %v253, 6
        %v256 = vrot.slane %v255, 4
        %v258 = vadd.f32 %v253, %v256
        %v259 = vld [vmem:[#allocation5] sm:$0x3]
        %v262 = vunpack.c.l.s4 1966171168
        %v263 = vunpack.c.0.s8 %v262
        %v264 = vlaneseq
        %v265 = vshrl.u32 %v264, 7
        %v266 = vsub.s32 %v263, %v265
        %v267 = vrot.slane %v258, %v266
        %v269 = vunpack.c.l.s4 1966171168
        %v270 = vunpack.c.0.s8 %v269
        %v271 = vlaneseq
        %v272 = vshrl.u32 %v271, 7
        %v273 = vsub.s32 %v270, %v272
        %v274 = vrot.slane %v267, %v273
        %v276 = vmul.f32 %v259, %v274
        %v277 = vld [vmem:[%s245] sm:$0x3]
        %v278 = vadd.f32 %v276, %v277
        %v279 = vlaneseq
        %vm280 = vcmp.ge.s32.totalorder %v279, 0
        %vm281 = vcmp.lt.s32.totalorder %v279, 256
        %vm282 = vmand %vm280, %vm281
        %283 = vst.msk [vmem:[%s239] sm:$0x3] %vm282, %v278
        %s284 = sand.u32 %s123, 1
        %s285 = scalar_lea.sflag [#allocation4], %s284
        %s286 = sand.u32 %s123, 1
        %s287 = smul.addr %s286, 2
        %s288 = scalar_lea.vmem [#allocation7], %s287
        // Predicated region
        $region41: #{tpu_custom_call.1} parent=31 // pred_check
          %p289 = pneg %p133
        $region42: #{tpu_custom_call.1} parent=31 // pred_check_branch
          %291 = sbr.rel (%p289) target = $region44
        $region43: #{tpu_custom_call.1} parent=31 // pred_region
          %s292 = smul.u32 2, %s26
          %s294 = ssub.s32 32, 32
          %295 = vsyncadd %s285, %s294
          %s296 = smul.addr %s25, 2
          %s297 = sadd.s32 %s292, %s296
          %s298 = smul.addr %s297, 16
          %s299 = scalar_lea.hbm %s3, %s298
          %s301 = sshll.u32 %s288, 4
          %s302 = int_to_ptr.vmem [resolvable:$true] %s301
          %304 = dma.vmem_to_hbm [thread:$0]  %s302, 32, %s299, %s285
        $region44: #{tpu_custom_call.1} parent=31 // pred_fallthru
          _
      $region32: #{tpu_custom_call.1} parent=5 // pred_fallthru
        _
      %p305 = scmp.le.s32.totalorder 2, %s16
      // Predicated region
      $region45: #{tpu_custom_call.1} parent=5 // pred_check
        %p306 = pneg %p305
      $region46: #{tpu_custom_call.1} parent=5 // pred_check_branch
        %308 = sbr.rel (%p306) target = $region48
      $region47: #{tpu_custom_call.1} parent=5 // pred_region
        %s309 = ssub.s32 %s16, 2
        // Predicated region
        $region49: #{tpu_custom_call.1} parent=47 // pred_check
          %p310 = pneg %p139
        $region50: #{tpu_custom_call.1} parent=47 // pred_check_branch
          %312 = sbr.rel (%p310) target = $region52
        $region51: #{tpu_custom_call.1} parent=47 // pred_region
          %s313 = sand.u32 %s124, 1
          %s314 = scalar_lea.sflag [#allocation4], %s313
          %s315 = sand.u32 %s124, 1
          %s316 = smul.addr %s315, 2
          %s317 = scalar_lea.vmem [#allocation7], %s316
          %318 = dma.done %s314, 32
        $region52: #{tpu_custom_call.1} parent=47 // pred_fallthru
          _
      $region48: #{tpu_custom_call.1} parent=5 // pred_fallthru
        _
    $region6: #{tpu_custom_call.1} parent=1 // loop_footer
      %s20 = sadd.s32 1, %s16
    $region7: #{tpu_custom_call.1} parent=1 // loop_footer_branch
      %15 = sbr.rel target = $region3
    $region8: #{tpu_custom_call.1} parent=1 // loop_exit
      _
    %319 = vsyncpa [#allocation3], 1
    %s320 = scalar_lea.sflag [#allocation3], 1
    %321 = vsyncpa %s320, 1
    %322 = vsyncpa [#allocation6], 1
    %323 = vsyncpa [#allocation4], 1
    %s324 = scalar_lea.sflag [#allocation4], 1
    %325 = vsyncpa %s324, 1

</llo_original>
